<compile_context>
chip_gen: v7x
topology: tpu7x:2x2x1
jax: 0.10.0
libtpu: 0.0.40
codegen_flags: <defaults>
</compile_context>

<pallas_src>
import jax
import jax.numpy as jnp
from jax.experimental import pallas as pl
from jax.experimental.pallas import tpu as pltpu


LANE = 128
SUBLANE = 8
NEG_BIG = -1e30  # softmax padding bias; relies on logits staying f32


def _round_up(x, m):
    return ((x + m - 1) // m) * m


def _default_block_b():
    """Batch-tile default from the TPU generation (v5e a bit smaller)."""
    try:
        kind = jax.devices()[0].device_kind.lower()
    except Exception:
        kind = ""
    is_v5e = ("v5" in kind) and (("lite" in kind) or ("v5e" in kind))
    return 512 if is_v5e else 1024


def mlp_kernel(x_ref, w1_ref, b1_ref, w2_ref, b2_ref, w3_ref, b3_ref, o_ref):
    """One batch tile of the fused 3-layer MLP. Feature dims lane-padded."""
    mxu_dtype = w1_ref.dtype

    # Layer 1: Linear + sigmoid.  x arrives f32; cast to MXU dtype in-kernel
    # (rides the VPU slot), accumulate in f32, sigmoid via one EUP tanh.
    x = x_ref[...].astype(mxu_dtype)
    h1 = jnp.dot(x, w1_ref[...], preferred_element_type=jnp.float32) + b1_ref[...]
    h1 = 0.5 * jnp.tanh(0.5 * h1) + 0.5

    # Layer 2: Linear + sigmoid.
    h2 = jnp.dot(h1.astype(mxu_dtype), w2_ref[...],
                 preferred_element_type=jnp.float32) + b2_ref[...]
    h2 = 0.5 * jnp.tanh(0.5 * h2) + 0.5

    # Layer 3: Linear + softmax over the (padded) class axis.
    # Padded classes: W cols = 0, bias = -1e30 -> exp underflows to 0.
    logits = jnp.dot(h2.astype(mxu_dtype), w3_ref[...],
                     preferred_element_type=jnp.float32) + b3_ref[...]
    m = jnp.max(logits, axis=1, keepdims=True)
    e = jnp.exp(logits - m)
    # Exact per-row normalization (one divide per row, negligible cost).
    o_ref[...] = e / jnp.sum(e, axis=1, keepdims=True)


def _pad_params(params, matmul_dtype):
    """Pad all feature dims to lane multiples; done ONCE at setup time."""
    w1, b1, w2, b2, w3, b3 = params
    d, d1 = w1.shape
    d2 = w2.shape[1]
    k = w3.shape[1]
    dp = _round_up(d, LANE)
    d1p, d2p, kp = _round_up(d1, LANE), _round_up(d2, LANE), _round_up(k, LANE)

    w1p = jnp.pad(w1, ((0, dp - d), (0, d1p - d1))).astype(matmul_dtype)
    b1p = jnp.pad(b1, ((0, 0), (0, d1p - d1))).astype(jnp.float32)
    w2p = jnp.pad(w2, ((0, d1p - d1), (0, d2p - d2))).astype(matmul_dtype)
    b2p = jnp.pad(b2, ((0, 0), (0, d2p - d2))).astype(jnp.float32)
    w3p = jnp.pad(w3, ((0, d2p - d2), (0, kp - k))).astype(matmul_dtype)
    b3p = jnp.pad(b3, ((0, 0), (0, kp - k)),
                  constant_values=NEG_BIG).astype(jnp.float32)
    return (w1p, b1p, w2p, b2p, w3p, b3p), (d, dp, kp, k)


def _forward_padded(x, padded_params, dims, block_b):
    w1, b1, w2, b2, w3, b3 = padded_params
    d, dp, kp, k = dims
    B = x.shape[0]

    # Batch tiling: pad B up to a sublane multiple, then to a tile multiple.
    B8 = _round_up(max(B, 1), SUBLANE)
    tb = min(block_b, B8)
    # Keep >= 2 grid steps when batch allows: v7x has 2 TensorCores and a
    # single-step grid leaves one idle; the extra step is negligible elsewhere.
    if B8 > SUBLANE and B8 <= tb:
        tb = _round_up(pl.cdiv(B8, 2), SUBLANE)
    Bp = _round_up(B8, tb)

    # Pad batch and feature dims (lane-dense x block); keep f32, cast in-kernel.
    xp = jnp.pad(x.astype(jnp.float32), ((0, Bp - B), (0, dp - d)))

    def resident(shape):
        # Whole array, same block every grid step -> stays resident in VMEM.
        return pl.BlockSpec(shape, lambda i: (0,) * len(shape))

    out = pl.pallas_call(
        mlp_kernel,
        out_shape=jax.ShapeDtypeStruct((Bp, kp), jnp.float32),
        grid=(Bp // tb,),
        in_specs=[
            pl.BlockSpec((tb, dp), lambda i: (i, 0)),   # x: tiled over batch
            resident(w1.shape), resident(b1.shape),
            resident(w2.shape), resident(b2.shape),
            resident(w3.shape), resident(b3.shape),
        ],
        out_specs=pl.BlockSpec((tb, kp), lambda i: (i, 0)),  # lane-dense store
        compiler_params=pltpu.CompilerParams(
            dimension_semantics=("parallel",),
            vmem_limit_bytes=32 * 1024 * 1024),
    )(xp, w1, b1, w2, b2, w3, b3)

    return out[:B, :k]


def make_net_forward(params, *, matmul_dtype=jnp.bfloat16, block_b=None):
    """Pad/cast the weights once, return a jitted forward(x) closure."""
    if block_b is None:
        block_b = _default_block_b()
    padded_params, dims = _pad_params(params, matmul_dtype)

    @jax.jit
    def forward(x):
        return _forward_padded(x, padded_params, dims, block_b)

    return forward


def net_forward(x, params, *, matmul_dtype=jnp.bfloat16, block_b=None):
    """One-shot convenience wrapper (pads params on every call)."""
    return make_net_forward(params, matmul_dtype=matmul_dtype,
                            block_b=block_b)(x)


def init_params(key, d, d1=300, d2=200, k=10):
    """Deterministic synthetic init mimicking nn.Linear (stored transposed)."""
    ks = jax.random.split(key, 6)
    s1 = 1.0 / jnp.sqrt(d)
    s2 = 1.0 / jnp.sqrt(d1)
    s3 = 1.0 / jnp.sqrt(d2)
    w1 = jax.random.uniform(ks[0], (d, d1), jnp.float32, -s1, s1)
    b1 = jax.random.uniform(ks[1], (1, d1), jnp.float32, -s1, s1)
    w2 = jax.random.uniform(ks[2], (d1, d2), jnp.float32, -s2, s2)
    b2 = jax.random.uniform(ks[3], (1, d2), jnp.float32, -s2, s2)
    w3 = jax.random.uniform(ks[4], (d2, k), jnp.float32, -s3, s3)
    b3 = jax.random.uniform(ks[5], (1, k), jnp.float32, -s3, s3)
    return (w1, b1, w2, b2, w3, b3)


def net_forward_ref(x, params):
    w1, b1, w2, b2, w3, b3 = params
    h1 = jax.nn.sigmoid(x @ w1 + b1)
    h2 = jax.nn.sigmoid(h1 @ w2 + b2)
    return jax.nn.softmax(h2 @ w3 + b3, axis=1)


if __name__ == "__main__":
    B, d, d1, d2, k = 8, 32, 300, 200, 10
    key = jax.random.PRNGKey(0)
    kx, kparam = jax.random.split(key)
    x = jax.random.normal(kx, (B, d), jnp.float32)
    params = init_params(kparam, d, d1, d2, k)

    ref = net_forward_ref(x, params)

    # 1) Production path: bf16 MXU operands, padded once, jitted wrapper.
    fwd = make_net_forward(params)                 # pads/casts weights once
    out = jax.block_until_ready(fwd(x))
    assert out.shape == (B, k)
    assert jnp.allclose(out, ref, atol=2e-2, rtol=2e-2)
    assert jnp.allclose(jnp.sum(out, axis=1), jnp.ones((B,)), atol=1e-5)

    # 2) Accuracy check: f32 MXU operands -> should match the reference tightly.
    fwd_f32 = make_net_forward(params, matmul_dtype=jnp.float32, block_b=512)
    out_f32 = jax.block_until_ready(fwd_f32(x))
    assert jnp.allclose(out_f32, ref, atol=1e-4, rtol=1e-4)
    assert jnp.allclose(jnp.sum(out_f32, axis=1), jnp.ones((B,)), atol=1e-5)

    print("KERNEL_OK")
</pallas_src>

<mosaic_0001>
module attributes {stable_mosaic.version = 11 : i64} {
  func.func @mlp_kernel(%arg0: i32, %arg1: memref<8x128xf32, #tpu.memory_space<vmem>>, %arg2: memref<128x384xbf16, #tpu.memory_space<vmem>>, %arg3: memref<1x384xf32, #tpu.memory_space<vmem>>, %arg4: memref<384x256xbf16, #tpu.memory_space<vmem>>, %arg5: memref<1x256xf32, #tpu.memory_space<vmem>>, %arg6: memref<256x128xbf16, #tpu.memory_space<vmem>>, %arg7: memref<1x128xf32, #tpu.memory_space<vmem>>, %arg8: memref<8x128xf32, #tpu.memory_space<vmem>>) attributes {dimension_semantics = [#tpu.dimension_semantics<parallel>], iteration_bounds = array<i64: 1>, scalar_prefetch = 0 : i64, scratch_operands = 0 : i64, tpu.core_type = #tpu.core_type<tc>, window_params = [{transform_indices = @transform_0, window_bounds = array<i64: 8, 128>}, {pipeline_mode = #tpu.pipeline_mode<synchronous>, transform_indices = @transform_1, window_bounds = array<i64: 128, 384>}, {pipeline_mode = #tpu.pipeline_mode<synchronous>, transform_indices = @transform_2, window_bounds = array<i64: 1, 384>}, {pipeline_mode = #tpu.pipeline_mode<synchronous>, transform_indices = @transform_3, window_bounds = array<i64: 384, 256>}, {pipeline_mode = #tpu.pipeline_mode<synchronous>, transform_indices = @transform_4, window_bounds = array<i64: 1, 256>}, {pipeline_mode = #tpu.pipeline_mode<synchronous>, transform_indices = @transform_5, window_bounds = array<i64: 256, 128>}, {pipeline_mode = #tpu.pipeline_mode<synchronous>, transform_indices = @transform_6, window_bounds = array<i64: 1, 128>}, {transform_indices = @transform_7, window_bounds = array<i64: 8, 128>}]} {
    %c0 = arith.constant 0 : index
    %c0_0 = arith.constant 0 : index
    %0 = vector.load %arg1[%c0, %c0_0] : memref<8x128xf32, #tpu.memory_space<vmem>>, vector<8x128xf32>
    %1 = arith.truncf %0 : vector<8x128xf32> to vector<8x128xbf16>
    %c0_1 = arith.constant 0 : index
    %c0_2 = arith.constant 0 : index
    %2 = vector.load %arg2[%c0_1, %c0_2] : memref<128x384xbf16, #tpu.memory_space<vmem>>, vector<128x384xbf16>
    %cst = arith.constant dense<0.000000e+00> : vector<8x384xf32>
    %3 = tpu.matmul %1, %2, %cst {dimension_numbers = #tpu.dot_dimension_numbers<[1], [0], [0], [1], [0, 0, 1, 1], [], []>} : vector<8x128xbf16>, vector<128x384xbf16>, vector<8x384xf32> -> vector<8x384xf32>
    %c0_3 = arith.constant 0 : index
    %c0_4 = arith.constant 0 : index
    %4 = vector.load %arg3[%c0_3, %c0_4] : memref<1x384xf32, #tpu.memory_space<vmem>>, vector<1x384xf32>
    %5 = vector.broadcast %4 : vector<1x384xf32> to vector<8x384xf32>
    %6 = arith.addf %3, %5 : vector<8x384xf32>
    %cst_5 = arith.constant 5.000000e-01 : f32
    %7 = vector.broadcast %cst_5 : f32 to vector<8x384xf32>
    %8 = arith.mulf %7, %6 : vector<8x384xf32>
    %9 = math.tanh %8 : vector<8x384xf32>
    %cst_6 = arith.constant 5.000000e-01 : f32
    %10 = vector.broadcast %cst_6 : f32 to vector<8x384xf32>
    %11 = arith.mulf %10, %9 : vector<8x384xf32>
    %cst_7 = arith.constant 5.000000e-01 : f32
    %12 = vector.broadcast %cst_7 : f32 to vector<8x384xf32>
    %13 = arith.addf %11, %12 : vector<8x384xf32>
    %14 = arith.truncf %13 : vector<8x384xf32> to vector<8x384xbf16>
    %c0_8 = arith.constant 0 : index
    %c0_9 = arith.constant 0 : index
    %15 = vector.load %arg4[%c0_8, %c0_9] : memref<384x256xbf16, #tpu.memory_space<vmem>>, vector<384x256xbf16>
    %cst_10 = arith.constant dense<0.000000e+00> : vector<8x256xf32>
    %16 = tpu.matmul %14, %15, %cst_10 {dimension_numbers = #tpu.dot_dimension_numbers<[1], [0], [0], [1], [0, 0, 1, 1], [], []>} : vector<8x384xbf16>, vector<384x256xbf16>, vector<8x256xf32> -> vector<8x256xf32>
    %c0_11 = arith.constant 0 : index
    %c0_12 = arith.constant 0 : index
    %17 = vector.load %arg5[%c0_11, %c0_12] : memref<1x256xf32, #tpu.memory_space<vmem>>, vector<1x256xf32>
    %18 = vector.broadcast %17 : vector<1x256xf32> to vector<8x256xf32>
    %19 = arith.addf %16, %18 : vector<8x256xf32>
    %cst_13 = arith.constant 5.000000e-01 : f32
    %20 = vector.broadcast %cst_13 : f32 to vector<8x256xf32>
    %21 = arith.mulf %20, %19 : vector<8x256xf32>
    %22 = math.tanh %21 : vector<8x256xf32>
    %cst_14 = arith.constant 5.000000e-01 : f32
    %23 = vector.broadcast %cst_14 : f32 to vector<8x256xf32>
    %24 = arith.mulf %23, %22 : vector<8x256xf32>
    %cst_15 = arith.constant 5.000000e-01 : f32
    %25 = vector.broadcast %cst_15 : f32 to vector<8x256xf32>
    %26 = arith.addf %24, %25 : vector<8x256xf32>
    %27 = arith.truncf %26 : vector<8x256xf32> to vector<8x256xbf16>
    %c0_16 = arith.constant 0 : index
    %c0_17 = arith.constant 0 : index
    %28 = vector.load %arg6[%c0_16, %c0_17] : memref<256x128xbf16, #tpu.memory_space<vmem>>, vector<256x128xbf16>
    %cst_18 = arith.constant dense<0.000000e+00> : vector<8x128xf32>
    %29 = tpu.matmul %27, %28, %cst_18 {dimension_numbers = #tpu.dot_dimension_numbers<[1], [0], [0], [1], [0, 0, 1, 1], [], []>} : vector<8x256xbf16>, vector<256x128xbf16>, vector<8x128xf32> -> vector<8x128xf32>
    %c0_19 = arith.constant 0 : index
    %c0_20 = arith.constant 0 : index
    %30 = vector.load %arg7[%c0_19, %c0_20] : memref<1x128xf32, #tpu.memory_space<vmem>>, vector<1x128xf32>
    %31 = vector.broadcast %30 : vector<1x128xf32> to vector<8x128xf32>
    %32 = arith.addf %29, %31 : vector<8x128xf32>
    %cst_21 = arith.constant dense<0xFF800000> : vector<8xf32>
    %33 = vector.multi_reduction <maximumf>, %32, %cst_21 [1] : vector<8x128xf32> to vector<8xf32>
    %34 = vector.shape_cast %33 : vector<8xf32> to vector<8x1xf32>
    %35 = vector.broadcast %34 : vector<8x1xf32> to vector<8x128xf32>
    %36 = arith.subf %32, %35 : vector<8x128xf32>
    %37 = math.exp %36 : vector<8x128xf32>
    %cst_22 = arith.constant dense<0.000000e+00> : vector<8xf32>
    %38 = vector.multi_reduction <add>, %37, %cst_22 [1] : vector<8x128xf32> to vector<8xf32>
    %39 = vector.shape_cast %38 : vector<8xf32> to vector<8x1xf32>
    %40 = vector.broadcast %39 : vector<8x1xf32> to vector<8x128xf32>
    %41 = arith.divf %37, %40 : vector<8x128xf32>
    %c0_23 = arith.constant 0 : index
    %c0_24 = arith.constant 0 : index
    %42 = vector.load %arg8[%c0_23, %c0_24] : memref<8x128xf32, #tpu.memory_space<vmem>>, vector<8x128xf32>
    tpu.vector_store %arg8[%c0_23, %c0_24], %41 {strides = array<i32>} : memref<8x128xf32, #tpu.memory_space<vmem>>, vector<8x128xf32>,
    return
  }
  func.func @transform_0(%arg0: i32) -> (i32, i32) {
    %c0_i32 = arith.constant 0 : i32
    %c0_i32_0 = arith.constant 0 : i32
    return %arg0, %c0_i32 : i32, i32
  }
  func.func @transform_1(%arg0: i32) -> (i32, i32) {
    %c0_i32 = arith.constant 0 : i32
    %c0_i32_0 = arith.constant 0 : i32
    %c0_i32_1 = arith.constant 0 : i32
    return %c0_i32, %c0_i32_0 : i32, i32
  }
  func.func @transform_2(%arg0: i32) -> (i32, i32) {
    %c0_i32 = arith.constant 0 : i32
    %c0_i32_0 = arith.constant 0 : i32
    %c0_i32_1 = arith.constant 0 : i32
    return %c0_i32, %c0_i32_0 : i32, i32
  }
  func.func @transform_3(%arg0: i32) -> (i32, i32) {
    %c0_i32 = arith.constant 0 : i32
    %c0_i32_0 = arith.constant 0 : i32
    %c0_i32_1 = arith.constant 0 : i32
    return %c0_i32, %c0_i32_0 : i32, i32
  }
  func.func @transform_4(%arg0: i32) -> (i32, i32) {
    %c0_i32 = arith.constant 0 : i32
    %c0_i32_0 = arith.constant 0 : i32
    %c0_i32_1 = arith.constant 0 : i32
    return %c0_i32, %c0_i32_0 : i32, i32
  }
  func.func @transform_5(%arg0: i32) -> (i32, i32) {
    %c0_i32 = arith.constant 0 : i32
    %c0_i32_0 = arith.constant 0 : i32
    %c0_i32_1 = arith.constant 0 : i32
    return %c0_i32, %c0_i32_0 : i32, i32
  }
  func.func @transform_6(%arg0: i32) -> (i32, i32) {
    %c0_i32 = arith.constant 0 : i32
    %c0_i32_0 = arith.constant 0 : i32
    %c0_i32_1 = arith.constant 0 : i32
    return %c0_i32, %c0_i32_0 : i32, i32
  }
  func.func @transform_7(%arg0: i32) -> (i32, i32) {
    %c0_i32 = arith.constant 0 : i32
    %c0_i32_0 = arith.constant 0 : i32
    return %arg0, %c0_i32 : i32, i32
  }
}

</mosaic_0001>

<llo_original>
// kernel: forward.1
$region0: #{forward.1}
  #allocation0 [shape = 'u32[]', space=smem, size = 0x4, offset = 0x4, fixed_abs, tag = 'smem constant byte address 0x4 - core index']
  #allocation1 [shape = 'u32[144,128]{1,0:T(1,128)}', space=vmem, size = 0x12000, scoped, tag = 'internal scratch']
  %s0 = inlined_call_operand.vmem [shape: f32[8,128], index: 0, kind: input, shape index: {}]
  %s1 = inlined_call_operand.vmem [shape: bf16[128,384], index: 1, kind: input, shape index: {}]
  %s2 = inlined_call_operand.vmem [shape: f32[1,384], index: 2, kind: input, shape index: {}]
  %s3 = inlined_call_operand.vmem [shape: bf16[384,256], index: 3, kind: input, shape index: {}]
  %s4 = inlined_call_operand.vmem [shape: f32[1,256], index: 4, kind: input, shape index: {}]
  %s5 = inlined_call_operand.vmem [shape: bf16[256,128], index: 5, kind: input, shape index: {}]
  %s6 = inlined_call_operand.vmem [shape: f32[1,128], index: 6, kind: input, shape index: {}]
  %s7 = inlined_call_operand.hbm [shape: f32[8,128], index: 7, kind: output, shape index: {}]
  %s8 = sld [smem:[#allocation0]]
  $region38: #{forward.1} parent=0
    _
  %s10 = ssub.s32 1, %s8
  %s11 = scalar_select 0, %s10, %s8
  $region1: #{forward.1} parent=0
    #allocation2 [shape = 'u8[4096]{0}', space=vmem, size = 0x1000, scoped, tag = 'output window, operand 0, single buffered']
    #allocation3 [shape = 's32[1]{0}', space=sflag, size = 0x4, scoped, tag = 'scoped memory for forward.1']
    %12 = vsyncpa [#allocation3], 0
    // Predicated region
    $region2: #{forward.1} parent=1 // pred_check
      _
    $region3: #{forward.1} parent=1 // pred_check_branch
      %14 = sbr.rel (0) target = $region5
    $region4: #{forward.1} parent=1 // pred_region
      _
    $region5: #{forward.1} parent=1 // pred_fallthru
      _
    // Predicated region
    $region6: #{forward.1} parent=1 // pred_check
      _
    $region7: #{forward.1} parent=1 // pred_check_branch
      %16 = sbr.rel (0) target = $region9
    $region8: #{forward.1} parent=1 // pred_region
      _
    $region9: #{forward.1} parent=1 // pred_fallthru
      _
    // Predicated region
    $region10: #{forward.1} parent=1 // pred_check
      _
    $region11: #{forward.1} parent=1 // pred_check_branch
      %18 = sbr.rel (0) target = $region13
    $region12: #{forward.1} parent=1 // pred_region
      _
    $region13: #{forward.1} parent=1 // pred_fallthru
      _
    // Predicated region
    $region14: #{forward.1} parent=1 // pred_check
      _
    $region15: #{forward.1} parent=1 // pred_check_branch
      %20 = sbr.rel (0) target = $region17
    $region16: #{forward.1} parent=1 // pred_region
      _
    $region17: #{forward.1} parent=1 // pred_fallthru
      _
    // Predicated region
    $region18: #{forward.1} parent=1 // pred_check
      _
    $region19: #{forward.1} parent=1 // pred_check_branch
      %22 = sbr.rel (0) target = $region21
    $region20: #{forward.1} parent=1 // pred_region
      _
    $region21: #{forward.1} parent=1 // pred_fallthru
      _
    // Predicated region
    $region22: #{forward.1} parent=1 // pred_check
      _
    $region23: #{forward.1} parent=1 // pred_check_branch
      %24 = sbr.rel (0) target = $region25
    $region24: #{forward.1} parent=1 // pred_region
      _
    $region25: #{forward.1} parent=1 // pred_fallthru
      _
    // Predicated region
    $region26: #{forward.1} parent=1 // pred_check
      _
    $region27: #{forward.1} parent=1 // pred_check_branch
      %26 = sbr.rel (0) target = $region29
    $region28: #{forward.1} parent=1 // pred_region
      _
    $region29: #{forward.1} parent=1 // pred_fallthru
      _
    %v28 = vld [vmem:[%s0] sm:$0xff]
    %v29 = vpack.c.bf16 %v28, %v28
    %v30 = vld [vmem:[%s1] sm:$0xff]
    %v31 = vld [vmem:[%s1 + $0x8] sm:$0xf]
    %v32 = vld [vmem:[%s1 + $0xc] sm:$0xff]
    %v33 = vld [vmem:[%s1 + $0x14] sm:$0xf]
    %v34 = vld [vmem:[%s1 + $0x18] sm:$0xff]
    %v35 = vld [vmem:[%s1 + $0x20] sm:$0xf]
    %v36 = vld [vmem:[%s1 + $0x24] sm:$0xff]
    %v37 = vld [vmem:[%s1 + $0x2c] sm:$0xf]
    %v38 = vld [vmem:[%s1 + $0x30] sm:$0xff]
    %v39 = vld [vmem:[%s1 + $0x38] sm:$0xf]
    %v40 = vld [vmem:[%s1 + $0x3c] sm:$0xff]
    %v41 = vld [vmem:[%s1 + $0x44] sm:$0xf]
    %v42 = vld [vmem:[%s1 + $0x48] sm:$0xff]
    %v43 = vld [vmem:[%s1 + $0x50] sm:$0xf]
    %v44 = vld [vmem:[%s1 + $0x54] sm:$0xff]
    %v45 = vld [vmem:[%s1 + $0x5c] sm:$0xf]
    %v46 = vld [vmem:[%s1 + $0x60] sm:$0xff]
    %v47 = vld [vmem:[%s1 + $0x68] sm:$0xf]
    %v48 = vld [vmem:[%s1 + $0x6c] sm:$0xff]
    %v49 = vld [vmem:[%s1 + $0x74] sm:$0xf]
    %v50 = vld [vmem:[%s1 + $0x78] sm:$0xff]
    %v51 = vld [vmem:[%s1 + $0x80] sm:$0xf]
    %v52 = vld [vmem:[%s1 + $0x84] sm:$0xff]
    %v53 = vld [vmem:[%s1 + $0x8c] sm:$0xf]
    %v54 = vld [vmem:[%s1 + $0x90] sm:$0xff]
    %v55 = vld [vmem:[%s1 + $0x98] sm:$0xf]
    %v56 = vld [vmem:[%s1 + $0x9c] sm:$0xff]
    %v57 = vld [vmem:[%s1 + $0xa4] sm:$0xf]
    %v58 = vld [vmem:[%s1 + $0xa8] sm:$0xff]
    %v59 = vld [vmem:[%s1 + $0xb0] sm:$0xf]
    %v60 = vld [vmem:[%s1 + $0xb4] sm:$0xff]
    %v61 = vld [vmem:[%s1 + $0xbc] sm:$0xf]
    %v62 = vld [vmem:[%s2] sm:$0x7]
    %v64 = vlaneseq
    %v65 = vshrl.u32 %v64, 7
    %v66 = vsub.s32 0, %v65
    %v67 = vrot.slane %v62, %v66
    %v68 = vlaneseq
    %v69 = vshrl.u32 %v68, 7
    %v70 = vsub.s32 1, %v69
    %v71 = vrot.slane %v62, %v70
    %v72 = vlaneseq
    %v73 = vshrl.u32 %v72, 7
    %v74 = vsub.s32 2, %v73
    %v75 = vrot.slane %v62, %v74
    %v111 = vunpack.c.l.b16 %v30
    %v112 = vunpack.c.h.b16 %v30
    %v113 = vunpack.c.l.b16 %v31
    %v114 = vunpack.c.l.b16 %v32
    %v115 = vunpack.c.h.b16 %v32
    %v116 = vunpack.c.l.b16 %v33
    %v117 = vunpack.c.l.b16 %v34
    %v118 = vunpack.c.h.b16 %v34
    %v119 = vunpack.c.l.b16 %v35
    %v120 = vunpack.c.l.b16 %v36
    %v121 = vunpack.c.h.b16 %v36
    %v122 = vunpack.c.l.b16 %v37
    %v123 = vunpack.c.l.b16 %v38
    %v124 = vunpack.c.h.b16 %v38
    %v125 = vunpack.c.l.b16 %v39
    %v126 = vunpack.c.l.b16 %v40
    %v127 = vunpack.c.h.b16 %v40
    %v128 = vunpack.c.l.b16 %v41
    %v129 = vunpack.c.l.b16 %v42
    %v130 = vunpack.c.h.b16 %v42
    %v131 = vunpack.c.l.b16 %v43
    %v132 = vunpack.c.l.b16 %v44
    %v133 = vunpack.c.h.b16 %v44
    %v134 = vunpack.c.l.b16 %v45
    %v135 = vunpack.c.l.b16 %v46
    %v136 = vunpack.c.h.b16 %v46
    %v137 = vunpack.c.l.b16 %v47
    %v138 = vunpack.c.l.b16 %v48
    %v139 = vunpack.c.h.b16 %v48
    %v140 = vunpack.c.l.b16 %v49
    %v141 = vunpack.c.l.b16 %v50
    %v142 = vunpack.c.h.b16 %v50
    %v143 = vunpack.c.l.b16 %v51
    %v144 = vunpack.c.l.b16 %v52
    %v145 = vunpack.c.h.b16 %v52
    %v146 = vunpack.c.l.b16 %v53
    %v147 = vunpack.c.l.b16 %v54
    %v148 = vunpack.c.h.b16 %v54
    %v149 = vunpack.c.l.b16 %v55
    %v150 = vunpack.c.l.b16 %v56
    %v151 = vunpack.c.h.b16 %v56
    %v152 = vunpack.c.l.b16 %v57
    %v153 = vunpack.c.l.b16 %v58
    %v154 = vunpack.c.h.b16 %v58
    %v155 = vunpack.c.l.b16 %v59
    %v156 = vunpack.c.l.b16 %v60
    %v157 = vunpack.c.h.b16 %v60
    %v158 = vunpack.c.l.b16 %v61
    %v159 = vpack.c.b16 %v114, %v111
    %v160 = vpack.c.b16 %v115, %v112
    %v161 = vpack.c.b16 %v116, %v113
    %v162 = vpack.c.b16 %v120, %v117
    %v163 = vpack.c.b16 %v121, %v118
    %v164 = vpack.c.b16 %v122, %v119
    %v165 = vpack.c.b16 %v126, %v123
    %v166 = vpack.c.b16 %v127, %v124
    %v167 = vpack.c.b16 %v128, %v125
    %v168 = vpack.c.b16 %v132, %v129
    %v169 = vpack.c.b16 %v133, %v130
    %v170 = vpack.c.b16 %v134, %v131
    %v171 = vpack.c.b16 %v138, %v135
    %v172 = vpack.c.b16 %v139, %v136
    %v173 = vpack.c.b16 %v140, %v137
    %v174 = vpack.c.b16 %v144, %v141
    %v175 = vpack.c.b16 %v145, %v142
    %v176 = vpack.c.b16 %v146, %v143
    %v177 = vpack.c.b16 %v150, %v147
    %v178 = vpack.c.b16 %v151, %v148
    %v179 = vpack.c.b16 %v152, %v149
    %v180 = vpack.c.b16 %v156, %v153
    %v181 = vpack.c.b16 %v157, %v154
    %v182 = vpack.c.b16 %v158, %v155
    %207 = vmatprep.subr.bf16.mxu0 %v160
    %208 = vmatpush1.bf16.msra.mxu0 %v159
    %209 = vmatprep.subr.bf16.mxu0 %v163
    %210 = vmatpush1.bf16.msra.mxu0 %v162
    %211 = vmatprep.subr.bf16.mxu0 %v166
    %212 = vmatpush1.bf16.msra.mxu0 %v165
    %213 = vmatprep.subr.bf16.mxu0 %v169
    %214 = vmatpush1.bf16.msra.mxu0 %v168
    %215 = vmatprep.subr.bf16.mxu0 %v172
    %216 = vmatpush1.bf16.msra.mxu0 %v171
    %217 = vmatprep.subr.bf16.mxu0 %v175
    %218 = vmatpush1.bf16.msra.mxu0 %v174
    %219 = vmatprep.subr.bf16.mxu0 %v178
    %220 = vmatpush1.bf16.msra.mxu0 %v177
    %221 = vmatprep.subr.bf16.mxu0 %v181
    %222 = vmatpush1.bf16.msra.mxu0 %v180
    %223 = vmatprep.subr.bf16.mxu0 0
    %224 = vmatpush1.bf16.msra.mxu0 0
    %225 = vmatprep.subr.bf16.mxu0 0
    %226 = vmatpush1.bf16.msra.mxu0 0
    %227 = vmatprep.subr.bf16.mxu0 0
    %228 = vmatpush1.bf16.msra.mxu0 0
    %229 = vmatprep.subr.bf16.mxu0 0
    %230 = vmatpush1.bf16.msra.mxu0 0
    %231 = vmatprep.subr.bf16.mxu0 0
    %232 = vmatpush1.bf16.msra.mxu0 0
    %233 = vmatprep.subr.bf16.mxu0 0
    %234 = vmatpush1.bf16.msra.mxu0 0
    %235 = vmatprep.subr.bf16.mxu0 0
    %236 = vmatpush1.bf16.msra.mxu0 0
    %237 = vmatprep.subr.bf16.mxu0 0
    %238 = vmatpush1.bf16.msra.mxu0 0
    %239 = vmatprep.mubr.bf16.mxu0 0
    %240 = vmatmul.mubr.bf16.gmra.mrb[0].mxu0 %v29
    %v241 = vpop.f32.mrb[0].mxu0
    %v242 = vadd.f32 %v67, %v241
    %v243 = vpop.f32.mrb[0].mxu0
    %v244 = vadd.f32 %v71, %v243
    %v245 = vpop.f32.mrb[0].mxu0
    %v246 = vpop.f32.mrb[0].mxu0
    %247 = vdwg.mxu0
    %248 = vmatprep.subr.bf16.mxu0 0
    %249 = vmatpush1.bf16.msra.mxu0 %v161
    %250 = vmatprep.subr.bf16.mxu0 0
    %251 = vmatpush1.bf16.msra.mxu0 %v164
    %252 = vmatprep.subr.bf16.mxu0 0
    %253 = vmatpush1.bf16.msra.mxu0 %v167
    %254 = vmatprep.subr.bf16.mxu0 0
    %255 = vmatpush1.bf16.msra.mxu0 %v170
    %256 = vmatprep.subr.bf16.mxu0 0
    %257 = vmatpush1.bf16.msra.mxu0 %v173
    %258 = vmatprep.subr.bf16.mxu0 0
    %259 = vmatpush1.bf16.msra.mxu0 %v176
    %260 = vmatprep.subr.bf16.mxu0 0
    %261 = vmatpush1.bf16.msra.mxu0 %v179
    %262 = vmatprep.subr.bf16.mxu0 0
    %263 = vmatpush1.bf16.msra.mxu0 %v182
    %264 = vmatprep.subr.bf16.mxu0 0
    %265 = vmatpush1.bf16.msra.mxu0 0
    %266 = vmatprep.subr.bf16.mxu0 0
    %267 = vmatpush1.bf16.msra.mxu0 0
    %268 = vmatprep.subr.bf16.mxu0 0
    %269 = vmatpush1.bf16.msra.mxu0 0
    %270 = vmatprep.subr.bf16.mxu0 0
    %271 = vmatpush1.bf16.msra.mxu0 0
    %272 = vmatprep.subr.bf16.mxu0 0
    %273 = vmatpush1.bf16.msra.mxu0 0
    %274 = vmatprep.subr.bf16.mxu0 0
    %275 = vmatpush1.bf16.msra.mxu0 0
    %276 = vmatprep.subr.bf16.mxu0 0
    %277 = vmatpush1.bf16.msra.mxu0 0
    %278 = vmatprep.subr.bf16.mxu0 0
    %279 = vmatpush1.bf16.msra.mxu0 0
    %280 = vmatprep.mubr.bf16.mxu0 0
    %281 = vmatmul.mubr.bf16.gmra.mrb[0].mxu0 %v29
    %v282 = vpop.f32.mrb[0].mxu0
    %v283 = vadd.f32 %v75, %v282
    %v284 = vpop.f32.mrb[0].mxu0
    %v285 = vpop.f32.mrb[0].mxu0
    %v286 = vpop.f32.mrb[0].mxu0
    %287 = vdwg.mxu0
    %v288 = vmul.f32 %v242, 0.5
    %v289 = vmul.f32 %v244, 0.5
    %v290 = vmul.f32 %v283, 0.5
    %v291 = vtanh.pop %v288
    %v292 = vtanh.pop %v289
    %v293 = vtanh.pop %v290
    %v294 = vmul.f32 %v291, 0.5
    %v295 = vmul.f32 %v292, 0.5
    %v296 = vmul.f32 %v293, 0.5
    %v297 = vadd.f32 %v294, 0.5
    %v298 = vadd.f32 %v295, 0.5
    %v299 = vadd.f32 %v296, 0.5
    %v300 = vpack.c.bf16 %v297, %v297
    %v301 = vpack.c.bf16 %v298, %v298
    %v302 = vpack.c.bf16 %v299, %v299
    %v303 = vld [vmem:[%s3] sm:$0xff]
    %v304 = vld [vmem:[%s3 + $0x8] sm:$0xff]
    %v305 = vld [vmem:[%s3 + $0x10] sm:$0xff]
    %v306 = vld [vmem:[%s3 + $0x18] sm:$0xff]
    %v307 = vld [vmem:[%s3 + $0x20] sm:$0xff]
    %v308 = vld [vmem:[%s3 + $0x28] sm:$0xff]
    %v309 = vld [vmem:[%s3 + $0x30] sm:$0xff]
    %v310 = vld [vmem:[%s3 + $0x38] sm:$0xff]
    %v311 = vld [vmem:[%s3 + $0x40] sm:$0xff]
    %v312 = vld [vmem:[%s3 + $0x48] sm:$0xff]
    %v313 = vld [vmem:[%s3 + $0x50] sm:$0xff]
    %v314 = vld [vmem:[%s3 + $0x58] sm:$0xff]
    %v315 = vld [vmem:[%s3 + $0x60] sm:$0xff]
    %v316 = vld [vmem:[%s3 + $0x68] sm:$0xff]
    %v317 = vld [vmem:[%s3 + $0x70] sm:$0xff]
    %v318 = vld [vmem:[%s3 + $0x78] sm:$0xff]
    %v319 = vld [vmem:[%s3 + $0x80] sm:$0xff]
    %v320 = vld [vmem:[%s3 + $0x88] sm:$0xff]
    %v321 = vld [vmem:[%s3 + $0x90] sm:$0xff]
    %v322 = vld [vmem:[%s3 + $0x98] sm:$0xff]
    %v323 = vld [vmem:[%s3 + $0xa0] sm:$0xff]
    %v324 = vld [vmem:[%s3 + $0xa8] sm:$0xff]
    %v325 = vld [vmem:[%s3 + $0xb0] sm:$0xff]
    %v326 = vld [vmem:[%s3 + $0xb8] sm:$0xff]
    %v327 = vld [vmem:[%s3 + $0xc0] sm:$0xff]
    %v328 = vld [vmem:[%s3 + $0xc8] sm:$0xff]
    %v329 = vld [vmem:[%s3 + $0xd0] sm:$0xff]
    %v330 = vld [vmem:[%s3 + $0xd8] sm:$0xff]
    %v331 = vld [vmem:[%s3 + $0xe0] sm:$0xff]
    %v332 = vld [vmem:[%s3 + $0xe8] sm:$0xff]
    %v333 = vld [vmem:[%s3 + $0xf0] sm:$0xff]
    %v334 = vld [vmem:[%s3 + $0xf8] sm:$0xff]
    %v335 = vld [vmem:[%s3 + $0x100] sm:$0xff]
    %v336 = vld [vmem:[%s3 + $0x108] sm:$0xff]
    %v337 = vld [vmem:[%s3 + $0x110] sm:$0xff]
    %v338 = vld [vmem:[%s3 + $0x118] sm:$0xff]
    %v339 = vld [vmem:[%s3 + $0x120] sm:$0xff]
    %v340 = vld [vmem:[%s3 + $0x128] sm:$0xff]
    %v341 = vld [vmem:[%s3 + $0x130] sm:$0xff]
    %v342 = vld [vmem:[%s3 + $0x138] sm:$0xff]
    %v343 = vld [vmem:[%s3 + $0x140] sm:$0xff]
    %v344 = vld [vmem:[%s3 + $0x148] sm:$0xff]
    %v345 = vld [vmem:[%s3 + $0x150] sm:$0xff]
    %v346 = vld [vmem:[%s3 + $0x158] sm:$0xff]
    %v347 = vld [vmem:[%s3 + $0x160] sm:$0xff]
    %v348 = vld [vmem:[%s3 + $0x168] sm:$0xff]
    %v349 = vld [vmem:[%s3 + $0x170] sm:$0xff]
    %v350 = vld [vmem:[%s3 + $0x178] sm:$0xff]
    %v351 = vld [vmem:[%s4] sm:$0x3]
    %v353 = vlaneseq
    %v354 = vshrl.u32 %v353, 7
    %v355 = vsub.s32 0, %v354
    %v356 = vrot.slane %v351, %v355
    %v357 = vlaneseq
    %v358 = vshrl.u32 %v357, 7
    %v359 = vsub.s32 1, %v358
    %v360 = vrot.slane %v351, %v359
    %v411 = vunpack.c.l.b16 %v303
    %v412 = vunpack.c.h.b16 %v303
    %v413 = vunpack.c.l.b16 %v304
    %v414 = vunpack.c.h.b16 %v304
    %v415 = vunpack.c.l.b16 %v305
    %v416 = vunpack.c.h.b16 %v305
    %v417 = vunpack.c.l.b16 %v306
    %v418 = vunpack.c.h.b16 %v306
    %v419 = vunpack.c.l.b16 %v307
    %v420 = vunpack.c.h.b16 %v307
    %v421 = vunpack.c.l.b16 %v308
    %v422 = vunpack.c.h.b16 %v308
    %v423 = vunpack.c.l.b16 %v309
    %v424 = vunpack.c.h.b16 %v309
    %v425 = vunpack.c.l.b16 %v310
    %v426 = vunpack.c.h.b16 %v310
    %v427 = vunpack.c.l.b16 %v311
    %v428 = vunpack.c.h.b16 %v311
    %v429 = vunpack.c.l.b16 %v312
    %v430 = vunpack.c.h.b16 %v312
    %v431 = vunpack.c.l.b16 %v313
    %v432 = vunpack.c.h.b16 %v313
    %v433 = vunpack.c.l.b16 %v314
    %v434 = vunpack.c.h.b16 %v314
    %v435 = vunpack.c.l.b16 %v315
    %v436 = vunpack.c.h.b16 %v315
    %v437 = vunpack.c.l.b16 %v316
    %v438 = vunpack.c.h.b16 %v316
    %v439 = vunpack.c.l.b16 %v317
    %v440 = vunpack.c.h.b16 %v317
    %v441 = vunpack.c.l.b16 %v318
    %v442 = vunpack.c.h.b16 %v318
    %v443 = vunpack.c.l.b16 %v319
    %v444 = vunpack.c.h.b16 %v319
    %v445 = vunpack.c.l.b16 %v320
    %v446 = vunpack.c.h.b16 %v320
    %v447 = vunpack.c.l.b16 %v321
    %v448 = vunpack.c.h.b16 %v321
    %v449 = vunpack.c.l.b16 %v322
    %v450 = vunpack.c.h.b16 %v322
    %v451 = vunpack.c.l.b16 %v323
    %v452 = vunpack.c.h.b16 %v323
    %v453 = vunpack.c.l.b16 %v324
    %v454 = vunpack.c.h.b16 %v324
    %v455 = vunpack.c.l.b16 %v325
    %v456 = vunpack.c.h.b16 %v325
    %v457 = vunpack.c.l.b16 %v326
    %v458 = vunpack.c.h.b16 %v326
    %v459 = vunpack.c.l.b16 %v327
    %v460 = vunpack.c.h.b16 %v327
    %v461 = vunpack.c.l.b16 %v328
    %v462 = vunpack.c.h.b16 %v328
    %v463 = vunpack.c.l.b16 %v329
    %v464 = vunpack.c.h.b16 %v329
    %v465 = vunpack.c.l.b16 %v330
    %v466 = vunpack.c.h.b16 %v330
    %v467 = vunpack.c.l.b16 %v331
    %v468 = vunpack.c.h.b16 %v331
    %v469 = vunpack.c.l.b16 %v332
    %v470 = vunpack.c.h.b16 %v332
    %v471 = vunpack.c.l.b16 %v333
    %v472 = vunpack.c.h.b16 %v333
    %v473 = vunpack.c.l.b16 %v334
    %v474 = vunpack.c.h.b16 %v334
    %v475 = vunpack.c.l.b16 %v335
    %v476 = vunpack.c.h.b16 %v335
    %v477 = vunpack.c.l.b16 %v336
    %v478 = vunpack.c.h.b16 %v336
    %v479 = vunpack.c.l.b16 %v337
    %v480 = vunpack.c.h.b16 %v337
    %v481 = vunpack.c.l.b16 %v338
    %v482 = vunpack.c.h.b16 %v338
    %v483 = vunpack.c.l.b16 %v339
    %v484 = vunpack.c.h.b16 %v339
    %v485 = vunpack.c.l.b16 %v340
    %v486 = vunpack.c.h.b16 %v340
    %v487 = vunpack.c.l.b16 %v341
    %v488 = vunpack.c.h.b16 %v341
    %v489 = vunpack.c.l.b16 %v342
    %v490 = vunpack.c.h.b16 %v342
    %v491 = vunpack.c.l.b16 %v343
    %v492 = vunpack.c.h.b16 %v343
    %v493 = vunpack.c.l.b16 %v344
    %v494 = vunpack.c.h.b16 %v344
    %v495 = vunpack.c.l.b16 %v345
    %v496 = vunpack.c.h.b16 %v345
    %v497 = vunpack.c.l.b16 %v346
    %v498 = vunpack.c.h.b16 %v346
    %v499 = vunpack.c.l.b16 %v347
    %v500 = vunpack.c.h.b16 %v347
    %v501 = vunpack.c.l.b16 %v348
    %v502 = vunpack.c.h.b16 %v348
    %v503 = vunpack.c.l.b16 %v349
    %v504 = vunpack.c.h.b16 %v349
    %v505 = vunpack.c.l.b16 %v350
    %v506 = vunpack.c.h.b16 %v350
    %v507 = vpack.c.b16 %v413, %v411
    %v508 = vpack.c.b16 %v414, %v412
    %v509 = vpack.c.b16 %v417, %v415
    %v510 = vpack.c.b16 %v418, %v416
    %v511 = vpack.c.b16 %v421, %v419
    %v512 = vpack.c.b16 %v422, %v420
    %v513 = vpack.c.b16 %v425, %v423
    %v514 = vpack.c.b16 %v426, %v424
    %v515 = vpack.c.b16 %v429, %v427
    %v516 = vpack.c.b16 %v430, %v428
    %v517 = vpack.c.b16 %v433, %v431
    %v518 = vpack.c.b16 %v434, %v432
    %v519 = vpack.c.b16 %v437, %v435
    %v520 = vpack.c.b16 %v438, %v436
    %v521 = vpack.c.b16 %v441, %v439
    %v522 = vpack.c.b16 %v442, %v440
    %v523 = vpack.c.b16 %v445, %v443
    %v524 = vpack.c.b16 %v446, %v444
    %v525 = vpack.c.b16 %v449, %v447
    %v526 = vpack.c.b16 %v450, %v448
    %v527 = vpack.c.b16 %v453, %v451
    %v528 = vpack.c.b16 %v454, %v452
    %v529 = vpack.c.b16 %v457, %v455
    %v530 = vpack.c.b16 %v458, %v456
    %v531 = vpack.c.b16 %v461, %v459
    %v532 = vpack.c.b16 %v462, %v460
    %v533 = vpack.c.b16 %v465, %v463
    %v534 = vpack.c.b16 %v466, %v464
    %v535 = vpack.c.b16 %v469, %v467
    %v536 = vpack.c.b16 %v470, %v468
    %v537 = vpack.c.b16 %v473, %v471
    %v538 = vpack.c.b16 %v474, %v472
    %v539 = vpack.c.b16 %v477, %v475
    %v540 = vpack.c.b16 %v478, %v476
    %v541 = vpack.c.b16 %v481, %v479
    %v542 = vpack.c.b16 %v482, %v480
    %v543 = vpack.c.b16 %v485, %v483
    %v544 = vpack.c.b16 %v486, %v484
    %v545 = vpack.c.b16 %v489, %v487
    %v546 = vpack.c.b16 %v490, %v488
    %v547 = vpack.c.b16 %v493, %v491
    %v548 = vpack.c.b16 %v494, %v492
    %v549 = vpack.c.b16 %v497, %v495
    %v550 = vpack.c.b16 %v498, %v496
    %v551 = vpack.c.b16 %v501, %v499
    %v552 = vpack.c.b16 %v502, %v500
    %v553 = vpack.c.b16 %v505, %v503
    %v554 = vpack.c.b16 %v506, %v504
    %603 = vmatprep.subr.bf16.mxu0 %v508
    %604 = vmatpush1.bf16.msra.mxu0 %v507
    %605 = vmatprep.subr.bf16.mxu0 %v510
    %606 = vmatpush1.bf16.msra.mxu0 %v509
    %607 = vmatprep.subr.bf16.mxu0 %v512
    %608 = vmatpush1.bf16.msra.mxu0 %v511
    %609 = vmatprep.subr.bf16.mxu0 %v514
    %610 = vmatpush1.bf16.msra.mxu0 %v513
    %611 = vmatprep.subr.bf16.mxu0 %v516
    %612 = vmatpush1.bf16.msra.mxu0 %v515
    %613 = vmatprep.subr.bf16.mxu0 %v518
    %614 = vmatpush1.bf16.msra.mxu0 %v517
    %615 = vmatprep.subr.bf16.mxu0 %v520
    %616 = vmatpush1.bf16.msra.mxu0 %v519
    %617 = vmatprep.subr.bf16.mxu0 %v522
    %618 = vmatpush1.bf16.msra.mxu0 %v521
    %619 = vmatprep.subr.bf16.mxu0 %v524
    %620 = vmatpush1.bf16.msra.mxu0 %v523
    %621 = vmatprep.subr.bf16.mxu0 %v526
    %622 = vmatpush1.bf16.msra.mxu0 %v525
    %623 = vmatprep.subr.bf16.mxu0 %v528
    %624 = vmatpush1.bf16.msra.mxu0 %v527
    %625 = vmatprep.subr.bf16.mxu0 %v530
    %626 = vmatpush1.bf16.msra.mxu0 %v529
    %627 = vmatprep.subr.bf16.mxu0 %v532
    %628 = vmatpush1.bf16.msra.mxu0 %v531
    %629 = vmatprep.subr.bf16.mxu0 %v534
    %630 = vmatpush1.bf16.msra.mxu0 %v533
    %631 = vmatprep.subr.bf16.mxu0 %v536
    %632 = vmatpush1.bf16.msra.mxu0 %v535
    %633 = vmatprep.subr.bf16.mxu0 %v538
    %634 = vmatpush1.bf16.msra.mxu0 %v537
    %635 = vmatprep.mubr.bf16.mxu0 %v301
    %636 = vmatmul.mubr.bf16.gmra.mrb[0].mxu0 %v300
    %v637 = vpop.f32.mrb[0].mxu0
    %v638 = vadd.f32 %v356, %v637
    %v639 = vpop.f32.mrb[0].mxu0
    %v640 = vadd.f32 %v360, %v639
    %v641 = vpop.f32.mrb[0].mxu0
    %v642 = vpop.f32.mrb[0].mxu0
    %643 = vdwg.mxu0
    %644 = vmatprep.subr.bf16.mxu0 %v540
    %645 = vmatpush1.bf16.msra.mxu0 %v539
    %646 = vmatprep.subr.bf16.mxu0 %v542
    %647 = vmatpush1.bf16.msra.mxu0 %v541
    %648 = vmatprep.subr.bf16.mxu0 %v544
    %649 = vmatpush1.bf16.msra.mxu0 %v543
    %650 = vmatprep.subr.bf16.mxu0 %v546
    %651 = vmatpush1.bf16.msra.mxu0 %v545
    %652 = vmatprep.subr.bf16.mxu0 %v548
    %653 = vmatpush1.bf16.msra.mxu0 %v547
    %654 = vmatprep.subr.bf16.mxu0 %v550
    %655 = vmatpush1.bf16.msra.mxu0 %v549
    %656 = vmatprep.subr.bf16.mxu0 %v552
    %657 = vmatpush1.bf16.msra.mxu0 %v551
    %658 = vmatprep.subr.bf16.mxu0 %v554
    %659 = vmatpush1.bf16.msra.mxu0 %v553
    %660 = vmatprep.subr.bf16.mxu0 0
    %661 = vmatpush1.bf16.msra.mxu0 0
    %662 = vmatprep.subr.bf16.mxu0 0
    %663 = vmatpush1.bf16.msra.mxu0 0
    %664 = vmatprep.subr.bf16.mxu0 0
    %665 = vmatpush1.bf16.msra.mxu0 0
    %666 = vmatprep.subr.bf16.mxu0 0
    %667 = vmatpush1.bf16.msra.mxu0 0
    %668 = vmatprep.subr.bf16.mxu0 0
    %669 = vmatpush1.bf16.msra.mxu0 0
    %670 = vmatprep.subr.bf16.mxu0 0
    %671 = vmatpush1.bf16.msra.mxu0 0
    %672 = vmatprep.subr.bf16.mxu0 0
    %673 = vmatpush1.bf16.msra.mxu0 0
    %674 = vmatprep.subr.bf16.mxu0 0
    %675 = vmatpush1.bf16.msra.mxu0 0
    %676 = vmatprep.mubr.bf16.mxu0 0
    %677 = vmatmul.mubr.bf16.gmra.mrb[0].mxu0 %v302
    %v678 = vpop.f32.mrb[0].mxu0
    %v679 = vadd.f32 %v638, %v678
    %v680 = vpop.f32.mrb[0].mxu0
    %v681 = vadd.f32 %v640, %v680
    %v682 = vpop.f32.mrb[0].mxu0
    %v683 = vpop.f32.mrb[0].mxu0
    %684 = vdwg.mxu0
    %v685 = vmul.f32 %v679, 0.5
    %v686 = vmul.f32 %v681, 0.5
    %v687 = vtanh.pop %v685
    %v688 = vtanh.pop %v686
    %v689 = vmul.f32 %v687, 0.5
    %v690 = vmul.f32 %v688, 0.5
    %v691 = vadd.f32 %v689, 0.5
    %v692 = vadd.f32 %v690, 0.5
    %v693 = vpack.c.bf16 %v691, %v691
    %v694 = vpack.c.bf16 %v692, %v692
    %v695 = vld [vmem:[%s5] sm:$0xf]
    %v696 = vld [vmem:[%s5 + $0x4] sm:$0xf]
    %v697 = vld [vmem:[%s5 + $0x8] sm:$0xf]
    %v698 = vld [vmem:[%s5 + $0xc] sm:$0xf]
    %v699 = vld [vmem:[%s5 + $0x10] sm:$0xf]
    %v700 = vld [vmem:[%s5 + $0x14] sm:$0xf]
    %v701 = vld [vmem:[%s5 + $0x18] sm:$0xf]
    %v702 = vld [vmem:[%s5 + $0x1c] sm:$0xf]
    %v703 = vld [vmem:[%s5 + $0x20] sm:$0xf]
    %v704 = vld [vmem:[%s5 + $0x24] sm:$0xf]
    %v705 = vld [vmem:[%s5 + $0x28] sm:$0xf]
    %v706 = vld [vmem:[%s5 + $0x2c] sm:$0xf]
    %v707 = vld [vmem:[%s5 + $0x30] sm:$0xf]
    %v708 = vld [vmem:[%s5 + $0x34] sm:$0xf]
    %v709 = vld [vmem:[%s5 + $0x38] sm:$0xf]
    %v710 = vld [vmem:[%s5 + $0x3c] sm:$0xf]
    %v711 = vld [vmem:[%s5 + $0x40] sm:$0xf]
    %v712 = vld [vmem:[%s5 + $0x44] sm:$0xf]
    %v713 = vld [vmem:[%s5 + $0x48] sm:$0xf]
    %v714 = vld [vmem:[%s5 + $0x4c] sm:$0xf]
    %v715 = vld [vmem:[%s5 + $0x50] sm:$0xf]
    %v716 = vld [vmem:[%s5 + $0x54] sm:$0xf]
    %v717 = vld [vmem:[%s5 + $0x58] sm:$0xf]
    %v718 = vld [vmem:[%s5 + $0x5c] sm:$0xf]
    %v719 = vld [vmem:[%s5 + $0x60] sm:$0xf]
    %v720 = vld [vmem:[%s5 + $0x64] sm:$0xf]
    %v721 = vld [vmem:[%s5 + $0x68] sm:$0xf]
    %v722 = vld [vmem:[%s5 + $0x6c] sm:$0xf]
    %v723 = vld [vmem:[%s5 + $0x70] sm:$0xf]
    %v724 = vld [vmem:[%s5 + $0x74] sm:$0xf]
    %v725 = vld [vmem:[%s5 + $0x78] sm:$0xf]
    %v726 = vld [vmem:[%s5 + $0x7c] sm:$0xf]
    %v727 = vld [vmem:[%s6] sm:$0x1]
    %v729 = vlaneseq
    %v730 = vshrl.u32 %v729, 7
    %v731 = vsub.s32 0, %v730
    %v732 = vrot.slane %v727, %v731
    %v766 = vunpack.c.l.b16 %v695
    %v767 = vunpack.c.l.b16 %v696
    %v768 = vunpack.c.l.b16 %v697
    %v769 = vunpack.c.l.b16 %v698
    %v770 = vunpack.c.l.b16 %v699
    %v771 = vunpack.c.l.b16 %v700
    %v772 = vunpack.c.l.b16 %v701
    %v773 = vunpack.c.l.b16 %v702
    %v774 = vunpack.c.l.b16 %v703
    %v775 = vunpack.c.l.b16 %v704
    %v776 = vunpack.c.l.b16 %v705
    %v777 = vunpack.c.l.b16 %v706
    %v778 = vunpack.c.l.b16 %v707
    %v779 = vunpack.c.l.b16 %v708
    %v780 = vunpack.c.l.b16 %v709
    %v781 = vunpack.c.l.b16 %v710
    %v782 = vunpack.c.l.b16 %v711
    %v783 = vunpack.c.l.b16 %v712
    %v784 = vunpack.c.l.b16 %v713
    %v785 = vunpack.c.l.b16 %v714
    %v786 = vunpack.c.l.b16 %v715
    %v787 = vunpack.c.l.b16 %v716
    %v788 = vunpack.c.l.b16 %v717
    %v789 = vunpack.c.l.b16 %v718
    %v790 = vunpack.c.l.b16 %v719
    %v791 = vunpack.c.l.b16 %v720
    %v792 = vunpack.c.l.b16 %v721
    %v793 = vunpack.c.l.b16 %v722
    %v794 = vunpack.c.l.b16 %v723
    %v795 = vunpack.c.l.b16 %v724
    %v796 = vunpack.c.l.b16 %v725
    %v797 = vunpack.c.l.b16 %v726
    %v798 = vpack.c.b16 %v767, %v766
    %v799 = vpack.c.b16 %v769, %v768
    %v800 = vpack.c.b16 %v771, %v770
    %v801 = vpack.c.b16 %v773, %v772
    %v802 = vpack.c.b16 %v775, %v774
    %v803 = vpack.c.b16 %v777, %v776
    %v804 = vpack.c.b16 %v779, %v778
    %v805 = vpack.c.b16 %v781, %v780
    %v806 = vpack.c.b16 %v783, %v782
    %v807 = vpack.c.b16 %v785, %v784
    %v808 = vpack.c.b16 %v787, %v786
    %v809 = vpack.c.b16 %v789, %v788
    %v810 = vpack.c.b16 %v791, %v790
    %v811 = vpack.c.b16 %v793, %v792
    %v812 = vpack.c.b16 %v795, %v794
    %v813 = vpack.c.b16 %v797, %v796
    %830 = vmatprep.subr.bf16.mxu0 0
    %831 = vmatpush1.bf16.msra.mxu0 %v798
    %832 = vmatprep.subr.bf16.mxu0 0
    %833 = vmatpush1.bf16.msra.mxu0 %v799
    %834 = vmatprep.subr.bf16.mxu0 0
    %835 = vmatpush1.bf16.msra.mxu0 %v800
    %836 = vmatprep.subr.bf16.mxu0 0
    %837 = vmatpush1.bf16.msra.mxu0 %v801
    %838 = vmatprep.subr.bf16.mxu0 0
    %839 = vmatpush1.bf16.msra.mxu0 %v802
    %840 = vmatprep.subr.bf16.mxu0 0
    %841 = vmatpush1.bf16.msra.mxu0 %v803
    %842 = vmatprep.subr.bf16.mxu0 0
    %843 = vmatpush1.bf16.msra.mxu0 %v804
    %844 = vmatprep.subr.bf16.mxu0 0
    %845 = vmatpush1.bf16.msra.mxu0 %v805
    %846 = vmatprep.subr.bf16.mxu0 0
    %847 = vmatpush1.bf16.msra.mxu0 %v806
    %848 = vmatprep.subr.bf16.mxu0 0
    %849 = vmatpush1.bf16.msra.mxu0 %v807
    %850 = vmatprep.subr.bf16.mxu0 0
    %851 = vmatpush1.bf16.msra.mxu0 %v808
    %852 = vmatprep.subr.bf16.mxu0 0
    %853 = vmatpush1.bf16.msra.mxu0 %v809
    %854 = vmatprep.subr.bf16.mxu0 0
    %855 = vmatpush1.bf16.msra.mxu0 %v810
    %856 = vmatprep.subr.bf16.mxu0 0
    %857 = vmatpush1.bf16.msra.mxu0 %v811
    %858 = vmatprep.subr.bf16.mxu0 0
    %859 = vmatpush1.bf16.msra.mxu0 %v812
    %860 = vmatprep.subr.bf16.mxu0 0
    %861 = vmatpush1.bf16.msra.mxu0 %v813
    %862 = vmatprep.mubr.bf16.mxu0 %v694
    %863 = vmatmul.mubr.bf16.gmra.mrb[0].mxu0 %v693
    %v864 = vpop.f32.mrb[0].mxu0
    %v865 = vadd.f32 %v732, %v864
    %v866 = vpop.f32.mrb[0].mxu0
    %v867 = vpop.f32.mrb[0].mxu0
    %v868 = vpop.f32.mrb[0].mxu0
    %869 = vdwg.mxu0
    %870 = vmax.xlane.f32.xlu0 %v865
    %v871 = vpop.xlane.xlu0 %870
    %v872 = vsub.f32 %v865, %v871
    %v873 = vmul.f32 %v872, 1.442695
    %v874 = vpow.pop %v873
    %875 = vadd.xlane.f32.xlu0 %v874
    %v876 = vpop.xlane.xlu0 %875
    %v877 = vrcp.pop %v876
    %v878 = vmul.f32 %v874, %v877
    %879 = vst [vmem:[#allocation2] sm:$0xff] %v878
    // Predicated region
    $region30: #{forward.1} parent=1 // pred_check
      _
    $region31: #{forward.1} parent=1 // pred_check_branch
      %881 = sbr.rel (0) target = $region33
    $region32: #{forward.1} parent=1 // pred_region
      %s883 = ssub.s32 128, 128
      %884 = vsyncadd [#allocation3], %s883
      %s886 = sshll.u32 [#allocation2], 4
      %s887 = int_to_ptr.vmem [resolvable:$true] %s886
      %889 = dma.vmem_to_hbm [thread:$0]  %s887, 128, %s7, [#allocation3]
    $region33: #{forward.1} parent=1 // pred_fallthru
      _
    // Predicated region
    $region34: #{forward.1} parent=1 // pred_check
      _
    $region35: #{forward.1} parent=1 // pred_check_branch
      %891 = sbr.rel (0) target = $region37
    $region36: #{forward.1} parent=1 // pred_region
      %892 = dma.done [#allocation3], 128
    $region37: #{forward.1} parent=1 // pred_fallthru
      _
    %893 = vsyncpa [#allocation3], 1

</llo_original>
